<compile_context>
chip_gen: v5e
topology: v5e:2x2
jax: 0.10.0
libtpu: 0.0.40
codegen_flags: <defaults>
</compile_context>

<pallas_src>
import functools

import jax
import jax.numpy as jnp
from jax import lax
from jax.experimental import pallas as pl
from jax.experimental.pallas import tpu as pltpu


def _round_up(x: int, m: int) -> int:
    return ((x + m - 1) // m) * m


def _cdiv(a: int, b: int) -> int:
    return (a + b - 1) // b


def dnn_regressor_kernel(x_ref, w1_ref, b1_ref, w2_ref, b2_ref, o_ref, *, mxu_dtype):
    # x tile arrives in native (TB, D) layout; cast (if any) happens in VMEM so
    # HBM traffic stays f32.
    x = x_ref[...].astype(mxu_dtype)
    # MXU: contract over D -> (H, TB).  Batch stays on the lane axis, H=48 on
    # sublanes; operand re-staging rides the XLU/vector-extended slots.
    h = lax.dot_general(
        w1_ref[...], x,
        dimension_numbers=(((1,), (1,)), ((), ())),
        preferred_element_type=jnp.float32)
    h = jnp.maximum(h + b1_ref[...], 0.0)
    # Layer 2 off the MXU: VPU broadcast-multiply by the (H, 1) weight column,
    # XLU cross-sublane sum -> lane-dense (1, TB) row, scalar bias from SMEM.
    out = jnp.sum(h * w2_ref[...], axis=0, keepdims=True) + b2_ref[0, 0]
    o_ref[...] = jnp.maximum(out, 0.0).astype(o_ref.dtype)


def dnn_regressor(x, w1, b1, w2, b2, *, block_batch=32768, mxu_dtype=jnp.bfloat16):
    """Fused forward pass of DNNRegressor.

    x:  (B, D) float32
    w1: (D, H) float32   (H = int(D * 1.5))
    b1: (1, H) float32
    w2: (H, 1) float32
    b2: (1, 1) float32
    returns (B, 1) float32
    """
    B, D = x.shape
    H = w1.shape[1]
    assert w1.shape == (D, H)
    assert b1.shape == (1, H)
    assert w2.shape == (H, 1)
    assert b2.shape == (1, 1)

    # --- batch tile: big (amortizes per-step overhead), multiple of 128 lanes,
    #     clamped by a conservative VMEM budget (safe on v7x's 64 MiB VMEM). ---
    tb = min(int(block_batch), _round_up(B, 128))
    tb = max(128, _round_up(tb, 128))

    def _vmem_bytes(t):
        return (2 * t * D * 4            # double-buffered f32 x tiles
                + t * D * 2              # in-kernel bf16 copy of the x tile
                + H * t * 4              # hidden activations (f32)
                + 2 * t * 4              # double-buffered output rows
                + (H * D + 2 * H + 1) * 4)  # resident weights / biases

    vmem_budget = 24 * 1024 * 1024
    while tb > 128 and _vmem_bytes(tb) > vmem_budget:
        tb = max(128, _round_up(tb // 2, 128))

    num_tiles = _cdiv(B, tb)
    if num_tiles > 1:
        # Rebalance so grid steps are roughly even (megacore sharding on v7x,
        # no tiny ragged final tile).
        tb = max(128, _round_up(_cdiv(B, num_tiles), 128))
        num_tiles = _cdiv(B, tb)

    # --- operands: x stays in native (B, D) layout; only the tiny weights get
    #     re-laid-out (feature-major) in the wrapper. ---
    f32 = jnp.float32
    x32 = jnp.asarray(x, f32)                        # (B, D)    streamed
    w1t = jnp.asarray(w1, f32).T.astype(mxu_dtype)   # (H, D)    resident
    b1c = jnp.asarray(b1, f32).T                     # (H, 1)    resident
    w2c = jnp.asarray(w2, f32)                       # (H, 1)    resident
    b2c = jnp.asarray(b2, f32)                       # (1, 1) -> SMEM scalar

    # VMEM limit derived from actual usage plus margin, capped for v7x.
    vmem_limit = min(max(int(_vmem_bytes(tb) * 1.5) + (4 << 20), 16 << 20), 40 << 20)

    cost = pl.CostEstimate(
        flops=int(2 * B * D * H + 4 * B * H),
        transcendentals=0,
        bytes_accessed=int(4 * (B * D + B + H * D + 2 * H + 1)),
    )

    kernel = functools.partial(dnn_regressor_kernel, mxu_dtype=mxu_dtype)

    out_row = pl.pallas_call(
        kernel,
        out_shape=jax.ShapeDtypeStruct((1, B), f32),
        grid_spec=pltpu.PrefetchScalarGridSpec(
            num_scalar_prefetch=0,
            grid=(num_tiles,),
            in_specs=[
                pl.BlockSpec((tb, D), lambda i: (i, 0)),   # x tile, native layout
                pl.BlockSpec((H, D), lambda i: (0, 0)),    # w1^T (resident)
                pl.BlockSpec((H, 1), lambda i: (0, 0)),    # b1   (resident)
                pl.BlockSpec((H, 1), lambda i: (0, 0)),    # w2   (resident)
                pl.BlockSpec(memory_space=pltpu.MemorySpace.SMEM),  # b2 scalar
            ],
            out_specs=pl.BlockSpec((1, tb), lambda i: (0, i)),
        ),
        compiler_params=pltpu.CompilerParams(
            dimension_semantics=("parallel",),
            vmem_limit_bytes=vmem_limit,
        ),
        cost_estimate=cost,
    )(x32, w1t, b1c, w2c, b2c)

    # Lane-dense (1, B) row back to the torch-style (B, 1) column (pure reshape,
    # contiguous memory — no transpose pass).
    return out_row.reshape(B, 1)


def init_params(key, input_dim, use_bias=True):
    """Deterministic init mimicking nn.Linear default (U(-1/sqrt(fan_in), +))."""
    hidden_dim = int(input_dim * 1.5)
    k1, k2, k3, k4 = jax.random.split(key, 4)

    bound1 = 1.0 / jnp.sqrt(jnp.float32(input_dim))
    w1 = jax.random.uniform(k1, (input_dim, hidden_dim), jnp.float32,
                            minval=-bound1, maxval=bound1)
    b1 = (jax.random.uniform(k2, (1, hidden_dim), jnp.float32,
                             minval=-bound1, maxval=bound1)
          if use_bias else jnp.zeros((1, hidden_dim), jnp.float32))

    bound2 = 1.0 / jnp.sqrt(jnp.float32(hidden_dim))
    w2 = jax.random.uniform(k3, (hidden_dim, 1), jnp.float32,
                            minval=-bound2, maxval=bound2)
    b2 = (jax.random.uniform(k4, (1, 1), jnp.float32,
                             minval=-bound2, maxval=bound2)
          if use_bias else jnp.zeros((1, 1), jnp.float32))
    return w1, b1, w2, b2


if __name__ == "__main__":
    key = jax.random.PRNGKey(0)
    k_x, k_x2, k_p = jax.random.split(key, 3)

    input_dim = 32            # -> hidden = int(32 * 1.5) = 48
    w1, b1, w2, b2 = init_params(k_p, input_dim, use_bias=True)

    def ref_fwd(xx):
        return jnp.maximum(jnp.maximum(xx @ w1 + b1, 0.0) @ w2 + b2, 0.0)

    # Small case (single tile), default bf16 MXU operands -> relaxed tolerance.
    x_small = jax.random.normal(k_x, (8, input_dim), jnp.float32)
    out_small = jax.block_until_ready(dnn_regressor(x_small, w1, b1, w2, b2))
    assert out_small.shape == (8, 1)
    assert jnp.allclose(out_small, ref_fwd(x_small), atol=2e-2, rtol=2e-2)

    # Multi-tile case with a ragged last tile (exercises grid + masked writeback),
    # f32 MXU path -> tight tolerance.
    x_big = jax.random.normal(k_x2, (300, input_dim), jnp.float32)
    out_big = jax.block_until_ready(
        dnn_regressor(x_big, w1, b1, w2, b2, block_batch=128,
                      mxu_dtype=jnp.float32))
    assert out_big.shape == (300, 1)
    assert jnp.allclose(out_big, ref_fwd(x_big), atol=1e-4, rtol=1e-4)

    print("KERNEL_OK")
</pallas_src>

<mosaic_0001>
module attributes {stable_mosaic.version = 11 : i64} {
  func.func @dnn_regressor_kernel(%arg0: i32, %arg1: memref<128x32xf32, #tpu.memory_space<vmem>>, %arg2: memref<48x32xbf16, #tpu.memory_space<vmem>>, %arg3: memref<48x1xf32, #tpu.memory_space<vmem>>, %arg4: memref<48x1xf32, #tpu.memory_space<vmem>>, %arg5: memref<1x1xf32, #tpu.memory_space<smem>>, %arg6: memref<1x128xf32, #tpu.memory_space<vmem>>) attributes {dimension_semantics = [#tpu.dimension_semantics<parallel>], iteration_bounds = array<i64: 1>, scalar_prefetch = 0 : i64, scratch_operands = 0 : i64, tpu.core_type = #tpu.core_type<tc>, window_params = [{transform_indices = @transform_0, window_bounds = array<i64: 128, 32>}, {pipeline_mode = #tpu.pipeline_mode<synchronous>, transform_indices = @transform_1, window_bounds = array<i64: 48, 32>}, {pipeline_mode = #tpu.pipeline_mode<synchronous>, transform_indices = @transform_2, window_bounds = array<i64: 48, 1>}, {pipeline_mode = #tpu.pipeline_mode<synchronous>, transform_indices = @transform_3, window_bounds = array<i64: 48, 1>}, {transform_indices = @transform_4, window_bounds = array<i64: 1, 1>}, {transform_indices = @transform_5, window_bounds = array<i64: 1, 128>}]} {
    %c0 = arith.constant 0 : index
    %c0_0 = arith.constant 0 : index
    %0 = vector.load %arg1[%c0, %c0_0] : memref<128x32xf32, #tpu.memory_space<vmem>>, vector<128x32xf32>
    %1 = arith.truncf %0 : vector<128x32xf32> to vector<128x32xbf16>
    %c0_1 = arith.constant 0 : index
    %c0_2 = arith.constant 0 : index
    %2 = vector.load %arg2[%c0_1, %c0_2] : memref<48x32xbf16, #tpu.memory_space<vmem>>, vector<48x32xbf16>
    %cst = arith.constant dense<0.000000e+00> : vector<48x128xf32>
    %3 = tpu.matmul %2, %1, %cst {dimension_numbers = #tpu.dot_dimension_numbers<[1], [1], [0], [0], [0, 0, 1, 0], [], []>} : vector<48x32xbf16>, vector<128x32xbf16>, vector<48x128xf32> -> vector<48x128xf32>
    %c0_3 = arith.constant 0 : index
    %c0_4 = arith.constant 0 : index
    %4 = vector.load %arg3[%c0_3, %c0_4] : memref<48x1xf32, #tpu.memory_space<vmem>>, vector<48x1xf32>
    %5 = vector.broadcast %4 : vector<48x1xf32> to vector<48x128xf32>
    %6 = arith.addf %3, %5 : vector<48x128xf32>
    %cst_5 = arith.constant 0.000000e+00 : f32
    %7 = vector.broadcast %cst_5 : f32 to vector<48x128xf32>
    %8 = arith.maximumf %6, %7 : vector<48x128xf32>
    %c0_6 = arith.constant 0 : index
    %c0_7 = arith.constant 0 : index
    %9 = vector.load %arg4[%c0_6, %c0_7] : memref<48x1xf32, #tpu.memory_space<vmem>>, vector<48x1xf32>
    %10 = vector.broadcast %9 : vector<48x1xf32> to vector<48x128xf32>
    %11 = arith.mulf %8, %10 : vector<48x128xf32>
    %cst_8 = arith.constant dense<0.000000e+00> : vector<128xf32>
    %12 = vector.multi_reduction <add>, %11, %cst_8 [0] : vector<48x128xf32> to vector<128xf32>
    %13 = vector.shape_cast %12 : vector<128xf32> to vector<1x128xf32>
    %c0_9 = arith.constant 0 : index
    %c0_10 = arith.constant 0 : index
    %14 = memref.load %arg5[%c0_9, %c0_10] : memref<1x1xf32, #tpu.memory_space<smem>>
    %15 = vector.broadcast %14 : f32 to vector<1x128xf32>
    %16 = arith.addf %13, %15 : vector<1x128xf32>
    %cst_11 = arith.constant 0.000000e+00 : f32
    %17 = vector.broadcast %cst_11 : f32 to vector<1x128xf32>
    %18 = arith.maximumf %16, %17 : vector<1x128xf32>
    %c0_12 = arith.constant 0 : index
    %c0_13 = arith.constant 0 : index
    %19 = vector.load %arg6[%c0_12, %c0_13] : memref<1x128xf32, #tpu.memory_space<vmem>>, vector<1x128xf32>
    tpu.vector_store %arg6[%c0_12, %c0_13], %18 {strides = array<i32>} : memref<1x128xf32, #tpu.memory_space<vmem>>, vector<1x128xf32>,
    return
  }
  func.func @transform_0(%arg0: i32) -> (i32, i32) {
    %c0_i32 = arith.constant 0 : i32
    %c0_i32_0 = arith.constant 0 : i32
    return %arg0, %c0_i32 : i32, i32
  }
  func.func @transform_1(%arg0: i32) -> (i32, i32) {
    %c0_i32 = arith.constant 0 : i32
    %c0_i32_0 = arith.constant 0 : i32
    %c0_i32_1 = arith.constant 0 : i32
    return %c0_i32, %c0_i32_0 : i32, i32
  }
  func.func @transform_2(%arg0: i32) -> (i32, i32) {
    %c0_i32 = arith.constant 0 : i32
    %c0_i32_0 = arith.constant 0 : i32
    %c0_i32_1 = arith.constant 0 : i32
    return %c0_i32, %c0_i32_0 : i32, i32
  }
  func.func @transform_3(%arg0: i32) -> (i32, i32) {
    %c0_i32 = arith.constant 0 : i32
    %c0_i32_0 = arith.constant 0 : i32
    %c0_i32_1 = arith.constant 0 : i32
    return %c0_i32, %c0_i32_0 : i32, i32
  }
  func.func @transform_4(%arg0: i32) -> (i32, i32) {
    %c0_i32 = arith.constant 0 : i32
    %c0_i32_0 = arith.constant 0 : i32
    %c0_i32_1 = arith.constant 0 : i32
    return %c0_i32, %c0_i32_0 : i32, i32
  }
  func.func @transform_5(%arg0: i32) -> (i32, i32) {
    %c0_i32 = arith.constant 0 : i32
    %c0_i32_0 = arith.constant 0 : i32
    return %c0_i32, %arg0 : i32, i32
  }
}

</mosaic_0001>

<llo_original>
// kernel: tpu_custom_call.1
$region0: #{tpu_custom_call.1}
  #allocation0 [shape = 'u32[]', space=smem, size = 0x4, offset = 0x4, fixed_abs, tag = 'smem constant byte address 0x4 - core index']
  #allocation1 [shape = 'u32[72,128]{1,0:T(1,128)}', space=vmem, size = 0x9000, scoped, tag = 'internal scratch']
  #allocation2 [shape = 'f32[1,1]{1,0:T(1,128)S(6)}', space=smem, size = 0x200, scoped, tag = 'scoped memory for tpu_custom_call.1']
  %s0 = inlined_call_operand.vmem [shape: f32[8,32], index: 0, kind: input, shape index: {}]
  %s1 = inlined_call_operand.vmem [shape: bf16[48,32], index: 1, kind: input, shape index: {}]
  %s2 = inlined_call_operand.vmem [shape: f32[48,1], index: 2, kind: input, shape index: {}]
  %s3 = inlined_call_operand.vmem [shape: f32[48,1], index: 3, kind: input, shape index: {}]
  %s4 = inlined_call_operand.<no memory space> [shape: f32[1,1], index: 4, kind: input, shape index: {}]
  %s5 = inlined_call_operand.hbm [shape: f32[1,8], index: 5, kind: output, shape index: {}]
  %s6 = sld [smem:[#allocation0]]
  $region30: #{tpu_custom_call.1} parent=0
    _
  %s8 = ssub.s32 1, %s6
  %s9 = scalar_select 0, %s8, %s6
  %10 = sst [smem:[#allocation2]] %s4
  $region1: #{tpu_custom_call.1} parent=0
    #allocation3 [shape = 'u8[512]{0}', space=vmem, size = 0x400, scoped, tag = 'output window, operand 0, single buffered']
    #allocation4 [shape = 's32[1]{0}', space=sflag, size = 0x4, scoped, tag = 'scoped memory for tpu_custom_call.1']
    %11 = vsyncpa [#allocation4], 0
    // Predicated region
    $region2: #{tpu_custom_call.1} parent=1 // pred_check
      _
    $region3: #{tpu_custom_call.1} parent=1 // pred_check_branch
      %13 = sbr.rel (0) target = $region5
    $region4: #{tpu_custom_call.1} parent=1 // pred_region
      _
    $region5: #{tpu_custom_call.1} parent=1 // pred_fallthru
      _
    // Predicated region
    $region6: #{tpu_custom_call.1} parent=1 // pred_check
      _
    $region7: #{tpu_custom_call.1} parent=1 // pred_check_branch
      %15 = sbr.rel (0) target = $region9
    $region8: #{tpu_custom_call.1} parent=1 // pred_region
      _
    $region9: #{tpu_custom_call.1} parent=1 // pred_fallthru
      _
    // Predicated region
    $region10: #{tpu_custom_call.1} parent=1 // pred_check
      _
    $region11: #{tpu_custom_call.1} parent=1 // pred_check_branch
      %17 = sbr.rel (0) target = $region13
    $region12: #{tpu_custom_call.1} parent=1 // pred_region
      _
    $region13: #{tpu_custom_call.1} parent=1 // pred_fallthru
      _
    // Predicated region
    $region14: #{tpu_custom_call.1} parent=1 // pred_check
      _
    $region15: #{tpu_custom_call.1} parent=1 // pred_check_branch
      %19 = sbr.rel (0) target = $region17
    $region16: #{tpu_custom_call.1} parent=1 // pred_region
      _
    $region17: #{tpu_custom_call.1} parent=1 // pred_fallthru
      _
    // Predicated region
    $region18: #{tpu_custom_call.1} parent=1 // pred_check
      _
    $region19: #{tpu_custom_call.1} parent=1 // pred_check_branch
      %21 = sbr.rel (0) target = $region21
    $region20: #{tpu_custom_call.1} parent=1 // pred_region
      _
    $region21: #{tpu_custom_call.1} parent=1 // pred_fallthru
      _
    %v22 = vld [vmem:[%s0] sm:$0xff]
    %v23 = vld [vmem:[%s0 + $0x8] sm:$0xff]
    %v24 = vld [vmem:[%s0 + $0x10] sm:$0xff]
    %v25 = vld [vmem:[%s0 + $0x18] sm:$0xff]
    %v26 = vld [vmem:[%s0 + $0x20] sm:$0xff]
    %v27 = vld [vmem:[%s0 + $0x28] sm:$0xff]
    %v28 = vld [vmem:[%s0 + $0x30] sm:$0xff]
    %v29 = vld [vmem:[%s0 + $0x38] sm:$0xff]
    %v30 = vld [vmem:[%s0 + $0x40] sm:$0xff]
    %v31 = vld [vmem:[%s0 + $0x48] sm:$0xff]
    %v32 = vld [vmem:[%s0 + $0x50] sm:$0xff]
    %v33 = vld [vmem:[%s0 + $0x58] sm:$0xff]
    %v34 = vld [vmem:[%s0 + $0x60] sm:$0xff]
    %v35 = vld [vmem:[%s0 + $0x68] sm:$0xff]
    %v36 = vld [vmem:[%s0 + $0x70] sm:$0xff]
    %v37 = vld [vmem:[%s0 + $0x78] sm:$0xff]
    %v38 = vpack.c.bf16 %v23, %v22
    %v39 = vpack.c.bf16 %v25, %v24
    %v40 = vpack.c.bf16 %v27, %v26
    %v41 = vpack.c.bf16 %v29, %v28
    %v42 = vpack.c.bf16 %v31, %v30
    %v43 = vpack.c.bf16 %v33, %v32
    %v44 = vpack.c.bf16 %v35, %v34
    %v45 = vpack.c.bf16 %v37, %v36
    %v46 = vld [vmem:[%s1] sm:$0xf]
    %v47 = vld [vmem:[%s1 + $0x4] sm:$0xf]
    %v48 = vld [vmem:[%s1 + $0x8] sm:$0xf]
    %v49 = vld [vmem:[%s1 + $0xc] sm:$0xf]
    %v50 = vld [vmem:[%s1 + $0x10] sm:$0xf]
    %v51 = vld [vmem:[%s1 + $0x14] sm:$0xf]
    %v52 = vld [vmem:[%s2] sm:$0xff]
    %v53 = vld [vmem:[%s2 + $0x8] sm:$0xff]
    %v54 = vld [vmem:[%s2 + $0x10] sm:$0xff]
    %v55 = vld [vmem:[%s2 + $0x18] sm:$0xff]
    %v56 = vld [vmem:[%s2 + $0x20] sm:$0xff]
    %v57 = vld [vmem:[%s2 + $0x28] sm:$0xff]
    %59 = vset.pattern.permute.xlu0 0
    %60 = vperm.xlu0 %59, %v52
    %v61 = vpop.permute.xlu0 %60
    %64 = vset.pattern.permute.xlu0 0
    %65 = vperm.xlu0 %64, %v53
    %v66 = vpop.permute.xlu0 %65
    %69 = vset.pattern.permute.xlu0 0
    %70 = vperm.xlu0 %69, %v54
    %v71 = vpop.permute.xlu0 %70
    %74 = vset.pattern.permute.xlu0 0
    %75 = vperm.xlu0 %74, %v55
    %v76 = vpop.permute.xlu0 %75
    %79 = vset.pattern.permute.xlu0 0
    %80 = vperm.xlu0 %79, %v56
    %v81 = vpop.permute.xlu0 %80
    %84 = vset.pattern.permute.xlu0 0
    %85 = vperm.xlu0 %84, %v57
    %v86 = vpop.permute.xlu0 %85
    %v94 = vunpack.c.l.b16 %v46
    %v95 = vunpack.c.l.b16 %v47
    %v96 = vunpack.c.l.b16 %v48
    %v97 = vunpack.c.l.b16 %v49
    %v98 = vunpack.c.l.b16 %v50
    %v99 = vunpack.c.l.b16 %v51
    %v100 = vpack.c.b16 %v95, %v94
    %v101 = vpack.c.b16 %v97, %v96
    %v102 = vpack.c.b16 %v99, %v98
    %vm103 = vcmask 261120
    %v105 = vsel %vm103, %v100, 0
    %v108 = vsel %vm103, %v101, 0
    %v111 = vsel %vm103, %v102, 0
    %v114 = vsel %vm103, %v38, 0
    %v117 = vsel %vm103, %v39, 0
    %v120 = vsel %vm103, %v40, 0
    %v123 = vsel %vm103, %v41, 0
    %v126 = vsel %vm103, %v42, 0
    %v129 = vsel %vm103, %v43, 0
    %v132 = vsel %vm103, %v44, 0
    %v135 = vsel %vm103, %v45, 0
    %137 = vmatpush.bf16.xpose.msra.mxu0 %v135
    %138 = vmatpush.bf16.xpose.msra.mxu0 %v132
    %139 = vmatpush.bf16.xpose.msra.mxu0 %v129
    %140 = vmatpush.bf16.xpose.msra.mxu0 %v126
    %141 = vmatpush.bf16.xpose.msra.mxu0 %v123
    %142 = vmatpush.bf16.xpose.msra.mxu0 %v120
    %143 = vmatpush.bf16.xpose.msra.mxu0 %v117
    %144 = vmatpush.bf16.xpose.msra.mxu0 %v114
    %145 = vmatmul.bf16.gmra.mxu0 %v105
    %v146 = vpop.f32.mrf.mxu0
    %v147 = vadd.f32 %v61, %v146
    %v148 = vpop.f32.mrf.mxu0
    %v149 = vadd.f32 %v66, %v148
    %150 = vmatmul.bf16.gmra.mxu0 %v108
    %v151 = vpop.f32.mrf.mxu0
    %v152 = vadd.f32 %v71, %v151
    %v153 = vpop.f32.mrf.mxu0
    %v154 = vadd.f32 %v76, %v153
    %155 = vmatmul.bf16.gmra.mxu0 %v111
    %v156 = vpop.f32.mrf.mxu0
    %v157 = vadd.f32 %v81, %v156
    %v158 = vpop.f32.mrf.mxu0
    %v159 = vadd.f32 %v86, %v158
    %160 = vdwg.mxu0
    %v161 = vmax.f32 %v147, 0.0
    %v162 = vmax.f32 %v149, 0.0
    %v163 = vmax.f32 %v152, 0.0
    %v164 = vmax.f32 %v154, 0.0
    %v165 = vmax.f32 %v157, 0.0
    %v166 = vmax.f32 %v159, 0.0
    %v167 = vld [vmem:[%s3] sm:$0xff]
    %v168 = vld [vmem:[%s3 + $0x8] sm:$0xff]
    %v169 = vld [vmem:[%s3 + $0x10] sm:$0xff]
    %v170 = vld [vmem:[%s3 + $0x18] sm:$0xff]
    %v171 = vld [vmem:[%s3 + $0x20] sm:$0xff]
    %v172 = vld [vmem:[%s3 + $0x28] sm:$0xff]
    %174 = vset.pattern.permute.xlu0 0
    %175 = vperm.xlu0 %174, %v167
    %v176 = vpop.permute.xlu0 %175
    %179 = vset.pattern.permute.xlu0 0
    %180 = vperm.xlu0 %179, %v168
    %v181 = vpop.permute.xlu0 %180
    %184 = vset.pattern.permute.xlu0 0
    %185 = vperm.xlu0 %184, %v169
    %v186 = vpop.permute.xlu0 %185
    %189 = vset.pattern.permute.xlu0 0
    %190 = vperm.xlu0 %189, %v170
    %v191 = vpop.permute.xlu0 %190
    %194 = vset.pattern.permute.xlu0 0
    %195 = vperm.xlu0 %194, %v171
    %v196 = vpop.permute.xlu0 %195
    %199 = vset.pattern.permute.xlu0 0
    %200 = vperm.xlu0 %199, %v172
    %v201 = vpop.permute.xlu0 %200
    %v203 = vmul.f32 %v161, %v176
    %v204 = vmul.f32 %v162, %v181
    %v205 = vmul.f32 %v163, %v186
    %v206 = vmul.f32 %v164, %v191
    %v207 = vmul.f32 %v165, %v196
    %v208 = vmul.f32 %v166, %v201
    %v209 = vadd.f32 %v203, %v204
    %v210 = vadd.f32 %v209, %v205
    %v211 = vadd.f32 %v210, %v206
    %v212 = vadd.f32 %v211, %v207
    %v213 = vadd.f32 %v212, %v208
    %v214 = vrot.slane %v213, 4
    %v215 = vadd.f32 %v213, %v214
    %v216 = vrot.slane %v215, 2
    %v217 = vadd.f32 %v215, %v216
    %v218 = vrot.slane %v217, 1
    %v219 = vadd.f32 %v217, %v218
    %s220 = sld [smem:[#allocation2]]
    %v221 = vstv %s220
    %v222 = vadd.f32 %v219, %v221
    %v223 = vmax.f32 %v222, 0.0
    %224 = vst [vmem:[#allocation3] sm:$0x1] %v223
    // Predicated region
    $region22: #{tpu_custom_call.1} parent=1 // pred_check
      _
    $region23: #{tpu_custom_call.1} parent=1 // pred_check_branch
      %226 = sbr.rel (0) target = $region25
    $region24: #{tpu_custom_call.1} parent=1 // pred_region
      %228 = vsyncadd [#allocation4], 0
      %s230 = sshll.u32 [#allocation3], 4
      %s231 = int_to_ptr.vmem [resolvable:$true] %s230
      %s232 = sshll.u32 %s5, 4
      %s233 = int_to_ptr.hbm [resolvable:$true] %s232
      %235 = dma.vmem_to_hbm [thread:$0]  %s231, 16, %s233, [#allocation4]
    $region25: #{tpu_custom_call.1} parent=1 // pred_fallthru
      _
    // Predicated region
    $region26: #{tpu_custom_call.1} parent=1 // pred_check
      _
    $region27: #{tpu_custom_call.1} parent=1 // pred_check_branch
      %237 = sbr.rel (0) target = $region29
    $region28: #{tpu_custom_call.1} parent=1 // pred_region
      %239 = dma.done [#allocation4], 16
    $region29: #{tpu_custom_call.1} parent=1 // pred_fallthru
      _
    %240 = vsyncpa [#allocation4], 1

</llo_original>
